<compile_context>
chip_gen: v6e
topology: v6e:2x2x1
jax: 0.10.0
libtpu: 0.0.40
codegen_flags: <defaults>
</compile_context>

<pallas_src>
import functools

import jax
import jax.numpy as jnp
from jax.experimental import pallas as pl
from jax.experimental.pallas import tpu as pltpu


# ----------------------------- fused kernel ---------------------------------

def vae_fused_kernel(x_ref, eps_ref,
                     w1_ref, b1_ref,
                     wmv_ref, bmv_ref,
                     w3_ref, b3_ref,
                     w4_ref, b4_ref,
                     recon_ref, mulv_ref, *, latent_dim):
    x = x_ref[...]                                   # f32 activations

    # encode: h1 = relu(x @ W1 + b1)   (bf16 MXU inputs, f32 accumulation)
    h1 = jnp.dot(x.astype(jnp.bfloat16), w1_ref[...],
                 preferred_element_type=jnp.float32) + b1_ref[...]
    h1 = jnp.maximum(h1, 0.0)

    # fused mu|logvar head: one (hidden, 2*latent) matmul, lane-dense result
    mulv = jnp.dot(h1.astype(jnp.bfloat16), wmv_ref[...],
                   preferred_element_type=jnp.float32) + bmv_ref[...]
    mu = mulv[:, :latent_dim]
    logvar = mulv[:, latent_dim:]

    # reparameterize: z = mu + eps * exp(0.5 * logvar)   (all f32, exp on EUP)
    std = jnp.exp(0.5 * logvar)
    z = mu + eps_ref[...] * std

    # decode: recon = relu(z @ W3 + b3) @ W4 + b4
    h3 = jnp.dot(z.astype(jnp.bfloat16), w3_ref[...],
                 preferred_element_type=jnp.float32) + b3_ref[...]
    h3 = jnp.maximum(h3, 0.0)
    recon = jnp.dot(h3.astype(jnp.bfloat16), w4_ref[...],
                    preferred_element_type=jnp.float32) + b4_ref[...]

    recon_ref[...] = recon
    mulv_ref[...] = mulv                             # lane-dense (tile_b, 2*latent)


# ----------------------------- wrapper ---------------------------------------

def _pick_tile_b(B):
    """Generation-aware batch tile (sublane dimension)."""
    try:
        kind = jax.devices()[0].device_kind.lower()
    except Exception:  # pragma: no cover
        kind = ""
    target = 128 if "v5" in kind else 256            # v5e MXU 128 rows; v6e/v7x 256
    cands = [c for c in range(8, min(B, target) + 1, 8) if B % c == 0]
    if not cands:
        return B                                     # tiny / ragged batch: one full tile
    best = max(cands)
    if "v7" in kind:
        # v7x: 2 TensorCores — prefer >=2 grid steps if the tile stays >=128 rows.
        two_step = [c for c in cands if c <= B // 2]
        if best == B and two_step and max(two_step) >= 128:
            best = max(two_step)
    return best


def _vmem_budget_bytes(tile_b, d_in, d_z, params):
    # double-buffered batch-tiled blocks (x, eps, recon, mu|logvar), f32
    act = 2 * 4 * tile_b * (d_in + d_z + d_in + 2 * d_z)
    # weights/biases (double-buffered by the default pipeline, tiny anyway)
    wgt = sum(2 * int(v.size) * v.dtype.itemsize for v in params.values())
    # live f32 intermediates (h1, mu|logvar, h3) + slack
    scratch = 4 * tile_b * (4 * d_in)
    return act + wgt + scratch


def vae_forward(x, eps, params, *, tile_b=None):
    """Fused VAE forward. Returns (recon, mu, logvar) like the torch module."""
    B, d_in = x.shape
    d_h = params["w1"].shape[1]
    d_z = params["w3"].shape[0]
    assert params["w_mv"].shape == (d_h, 2 * d_z)
    assert eps.shape == (B, d_z)

    if tile_b is None:
        tile_b = _pick_tile_b(B)
    assert B % tile_b == 0, "batch must be divisible by the batch tile"
    grid = (B // tile_b,)

    # batch-tiled activations / outputs (last dim = full feature dim -> lane dense)
    def row_spec(d):
        return pl.BlockSpec((tile_b, d), lambda i: (i, 0))

    # weights / biases: same block every grid step -> DMA'd once, VMEM-resident
    def full_spec(shape):
        return pl.BlockSpec(shape, lambda i, _s=len(shape): (0,) * _s)

    in_specs = [
        row_spec(d_in),                                   # x
        row_spec(d_z),                                    # eps
        full_spec(params["w1"].shape),  full_spec(params["b1"].shape),
        full_spec(params["w_mv"].shape), full_spec(params["b_mv"].shape),
        full_spec(params["w3"].shape),  full_spec(params["b3"].shape),
        full_spec(params["w4"].shape),  full_spec(params["b4"].shape),
    ]
    out_specs = (row_spec(d_in), row_spec(2 * d_z))
    out_shape = (jax.ShapeDtypeStruct((B, d_in), jnp.float32),
                 jax.ShapeDtypeStruct((B, 2 * d_z), jnp.float32))

    vmem_limit = min(64 << 20,
                     max(4 << 20, int(1.5 * _vmem_budget_bytes(tile_b, d_in, d_z, params))))

    recon, mulv = pl.pallas_call(
        functools.partial(vae_fused_kernel, latent_dim=d_z),
        grid=grid,
        in_specs=in_specs,
        out_specs=out_specs,
        out_shape=out_shape,
        compiler_params=pltpu.CompilerParams(
            dimension_semantics=("parallel",),
            vmem_limit_bytes=vmem_limit,
        ),
    )(x, eps,
      params["w1"], params["b1"],
      params["w_mv"], params["b_mv"],
      params["w3"], params["b3"],
      params["w4"], params["b4"])

    mu = mulv[:, :d_z]
    logvar = mulv[:, d_z:]
    return recon, mu, logvar


# ----------------------------- params ----------------------------------------

def init_params(key, input_dim, hidden_dim, latent_dim):
    """Weights stored as (Din, Dout) == torch W.T, in bf16; biases f32 (1, Dout).

    The mu / logvar heads are fused: w_mv = [w_mu | w_lv] (hidden, 2*latent),
    b_mv = [b_mu | b_lv] (1, 2*latent).
    """
    cnt = [0]

    def nxt(shape, scale=0.05):
        cnt[0] += 1
        return scale * jax.random.normal(jax.random.fold_in(key, cnt[0]),
                                         shape, jnp.float32)

    w_mu = nxt((hidden_dim, latent_dim))
    w_lv = nxt((hidden_dim, latent_dim))
    b_mu = nxt((1, latent_dim))
    b_lv = nxt((1, latent_dim))

    return dict(
        w1=nxt((input_dim, hidden_dim)).astype(jnp.bfloat16),
        b1=nxt((1, hidden_dim)),
        w_mv=jnp.concatenate([w_mu, w_lv], axis=1).astype(jnp.bfloat16),
        b_mv=jnp.concatenate([b_mu, b_lv], axis=1),
        w3=nxt((latent_dim, hidden_dim)).astype(jnp.bfloat16),
        b3=nxt((1, hidden_dim)),
        w4=nxt((hidden_dim, input_dim)).astype(jnp.bfloat16),
        b4=nxt((1, input_dim)),
    )


def vae_reference(x, eps, p, latent_dim):
    """Pure-JAX reference with the same bf16-in / f32-acc matmul recipe."""
    def mm(a, w):
        return jnp.dot(a.astype(jnp.bfloat16), w, preferred_element_type=jnp.float32)

    h1 = jnp.maximum(mm(x, p["w1"]) + p["b1"], 0.0)
    mulv = mm(h1, p["w_mv"]) + p["b_mv"]
    mu, logvar = mulv[:, :latent_dim], mulv[:, latent_dim:]
    z = mu + eps * jnp.exp(0.5 * logvar)
    h3 = jnp.maximum(mm(z, p["w3"]) + p["b3"], 0.0)
    recon = mm(h3, p["w4"]) + p["b4"]
    return recon, mu, logvar


# ----------------------------- main -------------------------------------------

if __name__ == "__main__":
    BATCH = 8          # sublane-aligned (small demo; production should use >=128)
    INPUT_DIM = 256    # lane-dense (multiple of 128)
    HIDDEN_DIM = 128   # lane-dense
    LATENT_DIM = 64    # fused head -> 2*latent = 128 lanes (lane-dense outputs)

    key = jax.random.PRNGKey(0)
    kx, keps, kp = jax.random.split(key, 3)
    x = jax.random.normal(kx, (BATCH, INPUT_DIM), jnp.float32)
    eps = jax.random.normal(keps, (BATCH, LATENT_DIM), jnp.float32)
    params = init_params(kp, INPUT_DIM, HIDDEN_DIM, LATENT_DIM)

    recon, mu, logvar = vae_forward(x, eps, params)
    recon = jax.block_until_ready(recon)
    mu = jax.block_until_ready(mu)
    logvar = jax.block_until_ready(logvar)

    assert recon.shape == (BATCH, INPUT_DIM), recon.shape
    assert mu.shape == (BATCH, LATENT_DIM), mu.shape
    assert logvar.shape == (BATCH, LATENT_DIM), logvar.shape
    assert jnp.all(jnp.isfinite(recon))
    assert jnp.all(jnp.isfinite(mu))
    assert jnp.all(jnp.isfinite(logvar))

    # correctness vs pure-JAX reference (same bf16/f32 matmul recipe)
    r_ref, mu_ref, lv_ref = vae_reference(x, eps, params, LATENT_DIM)
    assert jnp.allclose(recon, r_ref, atol=2e-2, rtol=2e-2)
    assert jnp.allclose(mu, mu_ref, atol=2e-2, rtol=2e-2)
    assert jnp.allclose(logvar, lv_ref, atol=2e-2, rtol=2e-2)

    print("KERNEL_OK")
</pallas_src>

<mosaic_0001>
module attributes {stable_mosaic.version = 11 : i64} {
  func.func @vae_fused_kernel(%arg0: i32, %arg1: memref<8x256xf32, #tpu.memory_space<vmem>>, %arg2: memref<8x64xf32, #tpu.memory_space<vmem>>, %arg3: memref<256x128xbf16, #tpu.memory_space<vmem>>, %arg4: memref<1x128xf32, #tpu.memory_space<vmem>>, %arg5: memref<128x128xbf16, #tpu.memory_space<vmem>>, %arg6: memref<1x128xf32, #tpu.memory_space<vmem>>, %arg7: memref<64x128xbf16, #tpu.memory_space<vmem>>, %arg8: memref<1x128xf32, #tpu.memory_space<vmem>>, %arg9: memref<128x256xbf16, #tpu.memory_space<vmem>>, %arg10: memref<1x256xf32, #tpu.memory_space<vmem>>, %arg11: memref<8x256xf32, #tpu.memory_space<vmem>>, %arg12: memref<8x128xf32, #tpu.memory_space<vmem>>) attributes {dimension_semantics = [#tpu.dimension_semantics<parallel>], iteration_bounds = array<i64: 1>, scalar_prefetch = 0 : i64, scratch_operands = 0 : i64, tpu.core_type = #tpu.core_type<tc>, window_params = [{transform_indices = @transform_0, window_bounds = array<i64: 8, 256>}, {transform_indices = @transform_1, window_bounds = array<i64: 8, 64>}, {pipeline_mode = #tpu.pipeline_mode<synchronous>, transform_indices = @transform_2, window_bounds = array<i64: 256, 128>}, {pipeline_mode = #tpu.pipeline_mode<synchronous>, transform_indices = @transform_3, window_bounds = array<i64: 1, 128>}, {pipeline_mode = #tpu.pipeline_mode<synchronous>, transform_indices = @transform_4, window_bounds = array<i64: 128, 128>}, {pipeline_mode = #tpu.pipeline_mode<synchronous>, transform_indices = @transform_5, window_bounds = array<i64: 1, 128>}, {pipeline_mode = #tpu.pipeline_mode<synchronous>, transform_indices = @transform_6, window_bounds = array<i64: 64, 128>}, {pipeline_mode = #tpu.pipeline_mode<synchronous>, transform_indices = @transform_7, window_bounds = array<i64: 1, 128>}, {pipeline_mode = #tpu.pipeline_mode<synchronous>, transform_indices = @transform_8, window_bounds = array<i64: 128, 256>}, {pipeline_mode = #tpu.pipeline_mode<synchronous>, transform_indices = @transform_9, window_bounds = array<i64: 1, 256>}, {transform_indices = @transform_10, window_bounds = array<i64: 8, 256>}, {transform_indices = @transform_11, window_bounds = array<i64: 8, 128>}]} {
    %c0 = arith.constant 0 : index
    %c0_0 = arith.constant 0 : index
    %0 = vector.load %arg1[%c0, %c0_0] : memref<8x256xf32, #tpu.memory_space<vmem>>, vector<8x256xf32>
    %1 = arith.truncf %0 : vector<8x256xf32> to vector<8x256xbf16>
    %c0_1 = arith.constant 0 : index
    %c0_2 = arith.constant 0 : index
    %2 = vector.load %arg3[%c0_1, %c0_2] : memref<256x128xbf16, #tpu.memory_space<vmem>>, vector<256x128xbf16>
    %cst = arith.constant dense<0.000000e+00> : vector<8x128xf32>
    %3 = tpu.matmul %1, %2, %cst {dimension_numbers = #tpu.dot_dimension_numbers<[1], [0], [0], [1], [0, 0, 1, 1], [], []>} : vector<8x256xbf16>, vector<256x128xbf16>, vector<8x128xf32> -> vector<8x128xf32>
    %c0_3 = arith.constant 0 : index
    %c0_4 = arith.constant 0 : index
    %4 = vector.load %arg4[%c0_3, %c0_4] : memref<1x128xf32, #tpu.memory_space<vmem>>, vector<1x128xf32>
    %5 = vector.broadcast %4 : vector<1x128xf32> to vector<8x128xf32>
    %6 = arith.addf %3, %5 : vector<8x128xf32>
    %cst_5 = arith.constant 0.000000e+00 : f32
    %7 = vector.broadcast %cst_5 : f32 to vector<8x128xf32>
    %8 = arith.maximumf %6, %7 : vector<8x128xf32>
    %9 = arith.truncf %8 : vector<8x128xf32> to vector<8x128xbf16>
    %c0_6 = arith.constant 0 : index
    %c0_7 = arith.constant 0 : index
    %10 = vector.load %arg5[%c0_6, %c0_7] : memref<128x128xbf16, #tpu.memory_space<vmem>>, vector<128x128xbf16>
    %cst_8 = arith.constant dense<0.000000e+00> : vector<8x128xf32>
    %11 = tpu.matmul %9, %10, %cst_8 {dimension_numbers = #tpu.dot_dimension_numbers<[1], [0], [0], [1], [0, 0, 1, 1], [], []>} : vector<8x128xbf16>, vector<128x128xbf16>, vector<8x128xf32> -> vector<8x128xf32>
    %c0_9 = arith.constant 0 : index
    %c0_10 = arith.constant 0 : index
    %12 = vector.load %arg6[%c0_9, %c0_10] : memref<1x128xf32, #tpu.memory_space<vmem>>, vector<1x128xf32>
    %13 = vector.broadcast %12 : vector<1x128xf32> to vector<8x128xf32>
    %14 = arith.addf %11, %13 : vector<8x128xf32>
    %15 = vector.extract_strided_slice %14 {offsets = [0, 0], sizes = [8, 64], strides = [1, 1]} : vector<8x128xf32> to vector<8x64xf32>
    %16 = vector.extract_strided_slice %14 {offsets = [0, 64], sizes = [8, 64], strides = [1, 1]} : vector<8x128xf32> to vector<8x64xf32>
    %cst_11 = arith.constant 5.000000e-01 : f32
    %17 = vector.broadcast %cst_11 : f32 to vector<8x64xf32>
    %18 = arith.mulf %17, %16 : vector<8x64xf32>
    %19 = math.exp %18 : vector<8x64xf32>
    %c0_12 = arith.constant 0 : index
    %c0_13 = arith.constant 0 : index
    %20 = vector.load %arg2[%c0_12, %c0_13] : memref<8x64xf32, #tpu.memory_space<vmem>>, vector<8x64xf32>
    %21 = arith.mulf %20, %19 : vector<8x64xf32>
    %22 = arith.addf %15, %21 : vector<8x64xf32>
    %23 = arith.truncf %22 : vector<8x64xf32> to vector<8x64xbf16>
    %c0_14 = arith.constant 0 : index
    %c0_15 = arith.constant 0 : index
    %24 = vector.load %arg7[%c0_14, %c0_15] : memref<64x128xbf16, #tpu.memory_space<vmem>>, vector<64x128xbf16>
    %cst_16 = arith.constant dense<0.000000e+00> : vector<8x128xf32>
    %25 = tpu.matmul %23, %24, %cst_16 {dimension_numbers = #tpu.dot_dimension_numbers<[1], [0], [0], [1], [0, 0, 1, 1], [], []>} : vector<8x64xbf16>, vector<64x128xbf16>, vector<8x128xf32> -> vector<8x128xf32>
    %c0_17 = arith.constant 0 : index
    %c0_18 = arith.constant 0 : index
    %26 = vector.load %arg8[%c0_17, %c0_18] : memref<1x128xf32, #tpu.memory_space<vmem>>, vector<1x128xf32>
    %27 = vector.broadcast %26 : vector<1x128xf32> to vector<8x128xf32>
    %28 = arith.addf %25, %27 : vector<8x128xf32>
    %cst_19 = arith.constant 0.000000e+00 : f32
    %29 = vector.broadcast %cst_19 : f32 to vector<8x128xf32>
    %30 = arith.maximumf %28, %29 : vector<8x128xf32>
    %31 = arith.truncf %30 : vector<8x128xf32> to vector<8x128xbf16>
    %c0_20 = arith.constant 0 : index
    %c0_21 = arith.constant 0 : index
    %32 = vector.load %arg9[%c0_20, %c0_21] : memref<128x256xbf16, #tpu.memory_space<vmem>>, vector<128x256xbf16>
    %cst_22 = arith.constant dense<0.000000e+00> : vector<8x256xf32>
    %33 = tpu.matmul %31, %32, %cst_22 {dimension_numbers = #tpu.dot_dimension_numbers<[1], [0], [0], [1], [0, 0, 1, 1], [], []>} : vector<8x128xbf16>, vector<128x256xbf16>, vector<8x256xf32> -> vector<8x256xf32>
    %c0_23 = arith.constant 0 : index
    %c0_24 = arith.constant 0 : index
    %34 = vector.load %arg10[%c0_23, %c0_24] : memref<1x256xf32, #tpu.memory_space<vmem>>, vector<1x256xf32>
    %35 = vector.broadcast %34 : vector<1x256xf32> to vector<8x256xf32>
    %36 = arith.addf %33, %35 : vector<8x256xf32>
    %c0_25 = arith.constant 0 : index
    %c0_26 = arith.constant 0 : index
    %37 = vector.load %arg11[%c0_25, %c0_26] : memref<8x256xf32, #tpu.memory_space<vmem>>, vector<8x256xf32>
    tpu.vector_store %arg11[%c0_25, %c0_26], %36 {strides = array<i32>} : memref<8x256xf32, #tpu.memory_space<vmem>>, vector<8x256xf32>,
    %c0_27 = arith.constant 0 : index
    %c0_28 = arith.constant 0 : index
    %38 = vector.load %arg12[%c0_27, %c0_28] : memref<8x128xf32, #tpu.memory_space<vmem>>, vector<8x128xf32>
    tpu.vector_store %arg12[%c0_27, %c0_28], %14 {strides = array<i32>} : memref<8x128xf32, #tpu.memory_space<vmem>>, vector<8x128xf32>,
    return
  }
  func.func @transform_0(%arg0: i32) -> (i32, i32) {
    %c0_i32 = arith.constant 0 : i32
    %c0_i32_0 = arith.constant 0 : i32
    return %arg0, %c0_i32 : i32, i32
  }
  func.func @transform_1(%arg0: i32) -> (i32, i32) {
    %c0_i32 = arith.constant 0 : i32
    %c0_i32_0 = arith.constant 0 : i32
    return %arg0, %c0_i32 : i32, i32
  }
  func.func @transform_2(%arg0: i32) -> (i32, i32) {
    %c0_i32 = arith.constant 0 : i32
    %c0_i32_0 = arith.constant 0 : i32
    %c0_i32_1 = arith.constant 0 : i32
    return %c0_i32, %c0_i32_0 : i32, i32
  }
  func.func @transform_3(%arg0: i32) -> (i32, i32) {
    %c0_i32 = arith.constant 0 : i32
    %c0_i32_0 = arith.constant 0 : i32
    %c0_i32_1 = arith.constant 0 : i32
    return %c0_i32, %c0_i32_0 : i32, i32
  }
  func.func @transform_4(%arg0: i32) -> (i32, i32) {
    %c0_i32 = arith.constant 0 : i32
    %c0_i32_0 = arith.constant 0 : i32
    %c0_i32_1 = arith.constant 0 : i32
    return %c0_i32, %c0_i32_0 : i32, i32
  }
  func.func @transform_5(%arg0: i32) -> (i32, i32) {
    %c0_i32 = arith.constant 0 : i32
    %c0_i32_0 = arith.constant 0 : i32
    %c0_i32_1 = arith.constant 0 : i32
    return %c0_i32, %c0_i32_0 : i32, i32
  }
  func.func @transform_6(%arg0: i32) -> (i32, i32) {
    %c0_i32 = arith.constant 0 : i32
    %c0_i32_0 = arith.constant 0 : i32
    %c0_i32_1 = arith.constant 0 : i32
    return %c0_i32, %c0_i32_0 : i32, i32
  }
  func.func @transform_7(%arg0: i32) -> (i32, i32) {
    %c0_i32 = arith.constant 0 : i32
    %c0_i32_0 = arith.constant 0 : i32
    %c0_i32_1 = arith.constant 0 : i32
    return %c0_i32, %c0_i32_0 : i32, i32
  }
  func.func @transform_8(%arg0: i32) -> (i32, i32) {
    %c0_i32 = arith.constant 0 : i32
    %c0_i32_0 = arith.constant 0 : i32
    %c0_i32_1 = arith.constant 0 : i32
    return %c0_i32, %c0_i32_0 : i32, i32
  }
  func.func @transform_9(%arg0: i32) -> (i32, i32) {
    %c0_i32 = arith.constant 0 : i32
    %c0_i32_0 = arith.constant 0 : i32
    %c0_i32_1 = arith.constant 0 : i32
    return %c0_i32, %c0_i32_0 : i32, i32
  }
  func.func @transform_10(%arg0: i32) -> (i32, i32) {
    %c0_i32 = arith.constant 0 : i32
    %c0_i32_0 = arith.constant 0 : i32
    return %arg0, %c0_i32 : i32, i32
  }
  func.func @transform_11(%arg0: i32) -> (i32, i32) {
    %c0_i32 = arith.constant 0 : i32
    %c0_i32_0 = arith.constant 0 : i32
    return %arg0, %c0_i32 : i32, i32
  }
}

</mosaic_0001>

<llo_original>
// kernel: tpu_custom_call.1
$region0: #{tpu_custom_call.1}
  #allocation0 [shape = 'u32[]', space=smem, size = 0x4, offset = 0x4, fixed_abs, tag = 'smem constant byte address 0x4 - core index']
  #allocation1 [shape = 'u32[144,128]{1,0:T(1,128)}', space=vmem, size = 0x12000, scoped, tag = 'internal scratch']
  %s0 = inlined_call_operand.hbm [shape: f32[8,256], index: 0, kind: input, shape index: {}]
  %s1 = inlined_call_operand.hbm [shape: f32[8,64], index: 1, kind: input, shape index: {}]
  %s2 = inlined_call_operand.hbm [shape: bf16[256,128], index: 2, kind: input, shape index: {}]
  %s3 = inlined_call_operand.vmem [shape: f32[1,128], index: 3, kind: input, shape index: {}]
  %s4 = inlined_call_operand.hbm [shape: bf16[128,128], index: 4, kind: input, shape index: {}]
  %s5 = inlined_call_operand.vmem [shape: f32[1,128], index: 5, kind: input, shape index: {}]
  %s6 = inlined_call_operand.hbm [shape: bf16[64,128], index: 6, kind: input, shape index: {}]
  %s7 = inlined_call_operand.vmem [shape: f32[1,128], index: 7, kind: input, shape index: {}]
  %s8 = inlined_call_operand.hbm [shape: bf16[128,256], index: 8, kind: input, shape index: {}]
  %s9 = inlined_call_operand.vmem [shape: f32[1,256], index: 9, kind: input, shape index: {}]
  %s10 = inlined_call_operand.hbm [shape: f32[8,256], index: 10, kind: output, shape index: {0}]
  %s11 = inlined_call_operand.hbm [shape: f32[8,128], index: 11, kind: output, shape index: {1}]
  %12 = xla_tuple %s10, %s11
  %s13 = sld [smem:[#allocation0]]
  $region82: #{tpu_custom_call.1} parent=0
    _
  %s15 = ssub.s32 1, %s13
  %s16 = scalar_select 0, %s15, %s13
  $region1: #{tpu_custom_call.1} parent=0
    #allocation2 [shape = 'u8[8192]{0}', space=vmem, size = 0x2000, scoped, tag = 'input window, operand 0, single buffered']
    #allocation3 [shape = 's32[1]{0}', space=sflag, size = 0x4, scoped, tag = 'scoped memory for tpu_custom_call.1']
    #allocation4 [shape = 's32[1]{0}', space=sflag, size = 0x4, scoped, tag = 'scoped memory for tpu_custom_call.1']
    #allocation5 [shape = 'u8[4096]{0}', space=vmem, size = 0x1000, scoped, tag = 'input window, operand 1, single buffered']
    #allocation6 [shape = 's32[1]{0}', space=sflag, size = 0x4, scoped, tag = 'scoped memory for tpu_custom_call.1']
    #allocation7 [shape = 'u8[65536]{0}', space=vmem, size = 0x10000, scoped, tag = 'input window, operand 2, single buffered']
    #allocation8 [shape = 'u8[32768]{0}', space=vmem, size = 0x8000, scoped, tag = 'input window, operand 4, single buffered']
    #allocation9 [shape = 's32[1]{0}', space=sflag, size = 0x4, scoped, tag = 'scoped memory for tpu_custom_call.1']
    #allocation10 [shape = 'u8[16384]{0}', space=vmem, size = 0x4000, scoped, tag = 'input window, operand 6, single buffered']
    #allocation11 [shape = 'u8[65536]{0}', space=vmem, size = 0x10000, scoped, tag = 'input window, operand 8, single buffered']
    #allocation12 [shape = 's32[1]{0}', space=sflag, size = 0x4, scoped, tag = 'scoped memory for tpu_custom_call.1']
    #allocation13 [shape = 'u8[8192]{0}', space=vmem, size = 0x2000, scoped, tag = 'output window, operand 0, single buffered']
    #allocation14 [shape = 'u8[4096]{0}', space=vmem, size = 0x1000, scoped, tag = 'output window, operand 1, single buffered']
    #allocation15 [shape = 's32[1]{0}', space=sflag, size = 0x4, scoped, tag = 'scoped memory for tpu_custom_call.1']
    %17 = vsyncpa [#allocation3], 0
    %18 = vsyncpa [#allocation6], 0
    %19 = vsyncpa [#allocation9], 0
    %20 = vsyncpa [#allocation12], 0
    %21 = vsyncpa [#allocation4], 0
    %22 = vsyncpa [#allocation15], 0
    // Predicated region
    $region2: #{tpu_custom_call.1} parent=1 // pred_check
      _
    $region3: #{tpu_custom_call.1} parent=1 // pred_check_branch
      %24 = sbr.rel (0) target = $region5
    $region4: #{tpu_custom_call.1} parent=1 // pred_region
      %s26 = ssub.s32 256, 256
      %27 = vsyncadd [#allocation3], %s26
      %s29 = sshll.u32 [#allocation2], 4
      %s30 = int_to_ptr.vmem [resolvable:$true] %s29
      %32 = dma.hbm_to_vmem [thread:$0]  %s0, 256, %s30, [#allocation3]
    $region5: #{tpu_custom_call.1} parent=1 // pred_fallthru
      _
    // Predicated region
    $region6: #{tpu_custom_call.1} parent=1 // pred_check
      _
    $region7: #{tpu_custom_call.1} parent=1 // pred_check_branch
      %34 = sbr.rel (0) target = $region9
    $region8: #{tpu_custom_call.1} parent=1 // pred_region
      %s36 = ssub.s32 128, 128
      %37 = vsyncadd [#allocation6], %s36
      %s39 = sshll.u32 [#allocation5], 4
      %s40 = int_to_ptr.vmem [resolvable:$true] %s39
      %42 = dma.hbm_to_vmem [thread:$0]  %s1, 128, %s40, [#allocation6]
    $region9: #{tpu_custom_call.1} parent=1 // pred_fallthru
      _
    // Predicated region
    $region10: #{tpu_custom_call.1} parent=1 // pred_check
      _
    $region11: #{tpu_custom_call.1} parent=1 // pred_check_branch
      %44 = sbr.rel (0) target = $region13
    $region12: #{tpu_custom_call.1} parent=1 // pred_region
      %s46 = ssub.s32 2048, 2048
      %47 = vsyncadd [#allocation6], %s46
      %s48 = sshll.u32 [#allocation7], 4
      %s49 = int_to_ptr.vmem [resolvable:$true] %s48
      %54 = dma.hbm_to_vmem [thread:$0]  %s2, 2048, %s49, [#allocation6], 64, 64, 4
    $region13: #{tpu_custom_call.1} parent=1 // pred_fallthru
      _
    // Predicated region
    $region14: #{tpu_custom_call.1} parent=1 // pred_check
      _
    $region15: #{tpu_custom_call.1} parent=1 // pred_check_branch
      %56 = sbr.rel (0) target = $region17
    $region16: #{tpu_custom_call.1} parent=1 // pred_region
      _
    $region17: #{tpu_custom_call.1} parent=1 // pred_fallthru
      _
    // Predicated region
    $region18: #{tpu_custom_call.1} parent=1 // pred_check
      _
    $region19: #{tpu_custom_call.1} parent=1 // pred_check_branch
      %58 = sbr.rel (0) target = $region21
    $region20: #{tpu_custom_call.1} parent=1 // pred_region
      %s60 = ssub.s32 1024, 1024
      %61 = vsyncadd [#allocation9], %s60
      %s62 = sshll.u32 [#allocation8], 4
      %s63 = int_to_ptr.vmem [resolvable:$true] %s62
      %68 = dma.hbm_to_vmem [thread:$0]  %s4, 1024, %s63, [#allocation9], 64, 64, 4
    $region21: #{tpu_custom_call.1} parent=1 // pred_fallthru
      _
    // Predicated region
    $region22: #{tpu_custom_call.1} parent=1 // pred_check
      _
    $region23: #{tpu_custom_call.1} parent=1 // pred_check_branch
      %70 = sbr.rel (0) target = $region25
    $region24: #{tpu_custom_call.1} parent=1 // pred_region
      _
    $region25: #{tpu_custom_call.1} parent=1 // pred_fallthru
      _
    // Predicated region
    $region26: #{tpu_custom_call.1} parent=1 // pred_check
      _
    $region27: #{tpu_custom_call.1} parent=1 // pred_check_branch
      %72 = sbr.rel (0) target = $region29
    $region28: #{tpu_custom_call.1} parent=1 // pred_region
      %s74 = ssub.s32 512, 512
      %75 = vsyncadd [#allocation9], %s74
      %s76 = sshll.u32 [#allocation10], 4
      %s77 = int_to_ptr.vmem [resolvable:$true] %s76
      %82 = dma.hbm_to_vmem [thread:$0]  %s6, 512, %s77, [#allocation9], 64, 64, 4
    $region29: #{tpu_custom_call.1} parent=1 // pred_fallthru
      _
    // Predicated region
    $region30: #{tpu_custom_call.1} parent=1 // pred_check
      _
    $region31: #{tpu_custom_call.1} parent=1 // pred_check_branch
      %84 = sbr.rel (0) target = $region33
    $region32: #{tpu_custom_call.1} parent=1 // pred_region
      _
    $region33: #{tpu_custom_call.1} parent=1 // pred_fallthru
      _
    // Predicated region
    $region34: #{tpu_custom_call.1} parent=1 // pred_check
      _
    $region35: #{tpu_custom_call.1} parent=1 // pred_check_branch
      %86 = sbr.rel (0) target = $region37
    $region36: #{tpu_custom_call.1} parent=1 // pred_region
      %s88 = ssub.s32 2048, 2048
      %89 = vsyncadd [#allocation12], %s88
      %s90 = sshll.u32 [#allocation11], 4
      %s91 = int_to_ptr.vmem [resolvable:$true] %s90
      %96 = dma.hbm_to_vmem [thread:$0]  %s8, 2048, %s91, [#allocation12], 128, 128, 8
    $region37: #{tpu_custom_call.1} parent=1 // pred_fallthru
      _
    // Predicated region
    $region38: #{tpu_custom_call.1} parent=1 // pred_check
      _
    $region39: #{tpu_custom_call.1} parent=1 // pred_check_branch
      %98 = sbr.rel (0) target = $region41
    $region40: #{tpu_custom_call.1} parent=1 // pred_region
      _
    $region41: #{tpu_custom_call.1} parent=1 // pred_fallthru
      _
    // Predicated region
    $region42: #{tpu_custom_call.1} parent=1 // pred_check
      _
    $region43: #{tpu_custom_call.1} parent=1 // pred_check_branch
      %100 = sbr.rel (0) target = $region45
    $region44: #{tpu_custom_call.1} parent=1 // pred_region
      %101 = dma.done [#allocation3], 256
    $region45: #{tpu_custom_call.1} parent=1 // pred_fallthru
      _
    // Predicated region
    $region46: #{tpu_custom_call.1} parent=1 // pred_check
      _
    $region47: #{tpu_custom_call.1} parent=1 // pred_check_branch
      %103 = sbr.rel (0) target = $region49
    $region48: #{tpu_custom_call.1} parent=1 // pred_region
      %104 = dma.done [#allocation6], 128
    $region49: #{tpu_custom_call.1} parent=1 // pred_fallthru
      _
    // Predicated region
    $region50: #{tpu_custom_call.1} parent=1 // pred_check
      _
    $region51: #{tpu_custom_call.1} parent=1 // pred_check_branch
      %106 = sbr.rel (0) target = $region53
    $region52: #{tpu_custom_call.1} parent=1 // pred_region
      %107 = dma.done [#allocation6], 2048
    $region53: #{tpu_custom_call.1} parent=1 // pred_fallthru
      _
    // Predicated region
    $region54: #{tpu_custom_call.1} parent=1 // pred_check
      _
    $region55: #{tpu_custom_call.1} parent=1 // pred_check_branch
      %109 = sbr.rel (0) target = $region57
    $region56: #{tpu_custom_call.1} parent=1 // pred_region
      %110 = dma.done [#allocation9], 1024
    $region57: #{tpu_custom_call.1} parent=1 // pred_fallthru
      _
    // Predicated region
    $region58: #{tpu_custom_call.1} parent=1 // pred_check
      _
    $region59: #{tpu_custom_call.1} parent=1 // pred_check_branch
      %112 = sbr.rel (0) target = $region61
    $region60: #{tpu_custom_call.1} parent=1 // pred_region
      %113 = dma.done [#allocation9], 512
    $region61: #{tpu_custom_call.1} parent=1 // pred_fallthru
      _
    // Predicated region
    $region62: #{tpu_custom_call.1} parent=1 // pred_check
      _
    $region63: #{tpu_custom_call.1} parent=1 // pred_check_branch
      %115 = sbr.rel (0) target = $region65
    $region64: #{tpu_custom_call.1} parent=1 // pred_region
      %116 = dma.done [#allocation12], 2048
    $region65: #{tpu_custom_call.1} parent=1 // pred_fallthru
      _
    %v118 = vld [vmem:[#allocation2] sm:$0xff]
    %v119 = vld [vmem:[#allocation2 + $0x8] sm:$0xff]
    %v120 = vpack.c.bf16 %v118, %v118
    %v121 = vpack.c.bf16 %v119, %v119
    %v122 = vld [vmem:[#allocation7] sm:$0xf]
    %v123 = vld [vmem:[#allocation7 + $0x4] sm:$0xf]
    %v124 = vld [vmem:[#allocation7 + $0x8] sm:$0xf]
    %v125 = vld [vmem:[#allocation7 + $0xc] sm:$0xf]
    %v126 = vld [vmem:[#allocation7 + $0x10] sm:$0xf]
    %v127 = vld [vmem:[#allocation7 + $0x14] sm:$0xf]
    %v128 = vld [vmem:[#allocation7 + $0x18] sm:$0xf]
    %v129 = vld [vmem:[#allocation7 + $0x1c] sm:$0xf]
    %v130 = vld [vmem:[#allocation7 + $0x20] sm:$0xf]
    %v131 = vld [vmem:[#allocation7 + $0x24] sm:$0xf]
    %v132 = vld [vmem:[#allocation7 + $0x28] sm:$0xf]
    %v133 = vld [vmem:[#allocation7 + $0x2c] sm:$0xf]
    %v134 = vld [vmem:[#allocation7 + $0x30] sm:$0xf]
    %v135 = vld [vmem:[#allocation7 + $0x34] sm:$0xf]
    %v136 = vld [vmem:[#allocation7 + $0x38] sm:$0xf]
    %v137 = vld [vmem:[#allocation7 + $0x3c] sm:$0xf]
    %v138 = vld [vmem:[#allocation7 + $0x40] sm:$0xf]
    %v139 = vld [vmem:[#allocation7 + $0x44] sm:$0xf]
    %v140 = vld [vmem:[#allocation7 + $0x48] sm:$0xf]
    %v141 = vld [vmem:[#allocation7 + $0x4c] sm:$0xf]
    %v142 = vld [vmem:[#allocation7 + $0x50] sm:$0xf]
    %v143 = vld [vmem:[#allocation7 + $0x54] sm:$0xf]
    %v144 = vld [vmem:[#allocation7 + $0x58] sm:$0xf]
    %v145 = vld [vmem:[#allocation7 + $0x5c] sm:$0xf]
    %v146 = vld [vmem:[#allocation7 + $0x60] sm:$0xf]
    %v147 = vld [vmem:[#allocation7 + $0x64] sm:$0xf]
    %v148 = vld [vmem:[#allocation7 + $0x68] sm:$0xf]
    %v149 = vld [vmem:[#allocation7 + $0x6c] sm:$0xf]
    %v150 = vld [vmem:[#allocation7 + $0x70] sm:$0xf]
    %v151 = vld [vmem:[#allocation7 + $0x74] sm:$0xf]
    %v152 = vld [vmem:[#allocation7 + $0x78] sm:$0xf]
    %v153 = vld [vmem:[#allocation7 + $0x7c] sm:$0xf]
    %v154 = vld [vmem:[%s3] sm:$0x1]
    %v156 = vlaneseq
    %v157 = vshrl.u32 %v156, 7
    %v158 = vsub.s32 0, %v157
    %v159 = vrot.slane %v154, %v158
    %v193 = vunpack.c.l.b16 %v122
    %v194 = vunpack.c.l.b16 %v123
    %v195 = vunpack.c.l.b16 %v124
    %v196 = vunpack.c.l.b16 %v125
    %v197 = vunpack.c.l.b16 %v126
    %v198 = vunpack.c.l.b16 %v127
    %v199 = vunpack.c.l.b16 %v128
    %v200 = vunpack.c.l.b16 %v129
    %v201 = vunpack.c.l.b16 %v130
    %v202 = vunpack.c.l.b16 %v131
    %v203 = vunpack.c.l.b16 %v132
    %v204 = vunpack.c.l.b16 %v133
    %v205 = vunpack.c.l.b16 %v134
    %v206 = vunpack.c.l.b16 %v135
    %v207 = vunpack.c.l.b16 %v136
    %v208 = vunpack.c.l.b16 %v137
    %v209 = vunpack.c.l.b16 %v138
    %v210 = vunpack.c.l.b16 %v139
    %v211 = vunpack.c.l.b16 %v140
    %v212 = vunpack.c.l.b16 %v141
    %v213 = vunpack.c.l.b16 %v142
    %v214 = vunpack.c.l.b16 %v143
    %v215 = vunpack.c.l.b16 %v144
    %v216 = vunpack.c.l.b16 %v145
    %v217 = vunpack.c.l.b16 %v146
    %v218 = vunpack.c.l.b16 %v147
    %v219 = vunpack.c.l.b16 %v148
    %v220 = vunpack.c.l.b16 %v149
    %v221 = vunpack.c.l.b16 %v150
    %v222 = vunpack.c.l.b16 %v151
    %v223 = vunpack.c.l.b16 %v152
    %v224 = vunpack.c.l.b16 %v153
    %v225 = vpack.c.b16 %v194, %v193
    %v226 = vpack.c.b16 %v196, %v195
    %v227 = vpack.c.b16 %v198, %v197
    %v228 = vpack.c.b16 %v200, %v199
    %v229 = vpack.c.b16 %v202, %v201
    %v230 = vpack.c.b16 %v204, %v203
    %v231 = vpack.c.b16 %v206, %v205
    %v232 = vpack.c.b16 %v208, %v207
    %v233 = vpack.c.b16 %v210, %v209
    %v234 = vpack.c.b16 %v212, %v211
    %v235 = vpack.c.b16 %v214, %v213
    %v236 = vpack.c.b16 %v216, %v215
    %v237 = vpack.c.b16 %v218, %v217
    %v238 = vpack.c.b16 %v220, %v219
    %v239 = vpack.c.b16 %v222, %v221
    %v240 = vpack.c.b16 %v224, %v223
    %257 = vmatprep.subr.bf16.mxu0 0
    %258 = vmatpush1.bf16.msra.mxu0 %v232
    %259 = vmatprep.subr.bf16.mxu0 0
    %260 = vmatpush1.bf16.msra.mxu0 %v231
    %261 = vmatprep.subr.bf16.mxu0 0
    %262 = vmatpush1.bf16.msra.mxu0 %v230
    %263 = vmatprep.subr.bf16.mxu0 0
    %264 = vmatpush1.bf16.msra.mxu0 %v229
    %265 = vmatprep.subr.bf16.mxu0 0
    %266 = vmatpush1.bf16.msra.mxu0 %v228
    %267 = vmatprep.subr.bf16.mxu0 0
    %268 = vmatpush1.bf16.msra.mxu0 %v227
    %269 = vmatprep.subr.bf16.mxu0 0
    %270 = vmatpush1.bf16.msra.mxu0 %v226
    %271 = vmatprep.subr.bf16.mxu0 0
    %272 = vmatpush1.bf16.msra.mxu0 %v225
    %273 = vmatprep.subr.bf16.mxu0 0
    %274 = vmatpush2.bf16.msra.mxu0 %v240
    %275 = vmatprep.subr.bf16.mxu0 0
    %276 = vmatpush2.bf16.msra.mxu0 %v239
    %277 = vmatprep.subr.bf16.mxu0 0
    %278 = vmatpush2.bf16.msra.mxu0 %v238
    %279 = vmatprep.subr.bf16.mxu0 0
    %280 = vmatpush2.bf16.msra.mxu0 %v237
    %281 = vmatprep.subr.bf16.mxu0 0
    %282 = vmatpush2.bf16.msra.mxu0 %v236
    %283 = vmatprep.subr.bf16.mxu0 0
    %284 = vmatpush2.bf16.msra.mxu0 %v235
    %285 = vmatprep.subr.bf16.mxu0 0
    %286 = vmatpush2.bf16.msra.mxu0 %v234
    %287 = vmatprep.subr.bf16.mxu0 0
    %288 = vmatpush2.bf16.msra.mxu0 %v233
    %289 = vmatprep.mubr.bf16.mxu0 %v121
    %290 = vmatmul.mubr.bf16.gmra.mxu0 %v120
    %v291 = vpop.f32.mrf.mxu0
    %v292 = vadd.f32 %v159, %v291
    %v293 = vpop.f32.mrf.mxu0
    %v294 = vpop.f32.mrf.mxu0
    %v295 = vpop.f32.mrf.mxu0
    %296 = vdwg.mxu0
    %v297 = vmax.f32 %v292, 0.0
    %v298 = vpack.c.bf16 %v297, %v297
    %v299 = vld [vmem:[#allocation8] sm:$0xf]
    %v300 = vld [vmem:[#allocation8 + $0x4] sm:$0xf]
    %v301 = vld [vmem:[#allocation8 + $0x8] sm:$0xf]
    %v302 = vld [vmem:[#allocation8 + $0xc] sm:$0xf]
    %v303 = vld [vmem:[#allocation8 + $0x10] sm:$0xf]
    %v304 = vld [vmem:[#allocation8 + $0x14] sm:$0xf]
    %v305 = vld [vmem:[#allocation8 + $0x18] sm:$0xf]
    %v306 = vld [vmem:[#allocation8 + $0x1c] sm:$0xf]
    %v307 = vld [vmem:[#allocation8 + $0x20] sm:$0xf]
    %v308 = vld [vmem:[#allocation8 + $0x24] sm:$0xf]
    %v309 = vld [vmem:[#allocation8 + $0x28] sm:$0xf]
    %v310 = vld [vmem:[#allocation8 + $0x2c] sm:$0xf]
    %v311 = vld [vmem:[#allocation8 + $0x30] sm:$0xf]
    %v312 = vld [vmem:[#allocation8 + $0x34] sm:$0xf]
    %v313 = vld [vmem:[#allocation8 + $0x38] sm:$0xf]
    %v314 = vld [vmem:[#allocation8 + $0x3c] sm:$0xf]
    %v315 = vld [vmem:[%s5] sm:$0x1]
    %v317 = vlaneseq
    %v318 = vshrl.u32 %v317, 7
    %v319 = vsub.s32 0, %v318
    %v320 = vrot.slane %v315, %v319
    %v338 = vunpack.c.l.b16 %v299
    %v339 = vunpack.c.l.b16 %v300
    %v340 = vunpack.c.l.b16 %v301
    %v341 = vunpack.c.l.b16 %v302
    %v342 = vunpack.c.l.b16 %v303
    %v343 = vunpack.c.l.b16 %v304
    %v344 = vunpack.c.l.b16 %v305
    %v345 = vunpack.c.l.b16 %v306
    %v346 = vunpack.c.l.b16 %v307
    %v347 = vunpack.c.l.b16 %v308
    %v348 = vunpack.c.l.b16 %v309
    %v349 = vunpack.c.l.b16 %v310
    %v350 = vunpack.c.l.b16 %v311
    %v351 = vunpack.c.l.b16 %v312
    %v352 = vunpack.c.l.b16 %v313
    %v353 = vunpack.c.l.b16 %v314
    %v354 = vpack.c.b16 %v339, %v338
    %v355 = vpack.c.b16 %v341, %v340
    %v356 = vpack.c.b16 %v343, %v342
    %v357 = vpack.c.b16 %v345, %v344
    %v358 = vpack.c.b16 %v347, %v346
    %v359 = vpack.c.b16 %v349, %v348
    %v360 = vpack.c.b16 %v351, %v350
    %v361 = vpack.c.b16 %v353, %v352
    %370 = vmatprep.subr.bf16.mxu0 0
    %371 = vmatpush1.bf16.msra.mxu0 %v361
    %372 = vmatprep.subr.bf16.mxu0 0
    %373 = vmatpush1.bf16.msra.mxu0 %v360
    %374 = vmatprep.subr.bf16.mxu0 0
    %375 = vmatpush1.bf16.msra.mxu0 %v359
    %376 = vmatprep.subr.bf16.mxu0 0
    %377 = vmatpush1.bf16.msra.mxu0 %v358
    %378 = vmatprep.subr.bf16.mxu0 0
    %379 = vmatpush1.bf16.msra.mxu0 %v357
    %380 = vmatprep.subr.bf16.mxu0 0
    %381 = vmatpush1.bf16.msra.mxu0 %v356
    %382 = vmatprep.subr.bf16.mxu0 0
    %383 = vmatpush1.bf16.msra.mxu0 %v355
    %384 = vmatprep.subr.bf16.mxu0 0
    %385 = vmatpush1.bf16.msra.mxu0 %v354
    %386 = vmatprep.subr.bf16.mxu0 0
    %387 = vmatpush2.bf16.msra.mxu0 0
    %388 = vmatprep.subr.bf16.mxu0 0
    %389 = vmatpush2.bf16.msra.mxu0 0
    %390 = vmatprep.subr.bf16.mxu0 0
    %391 = vmatpush2.bf16.msra.mxu0 0
    %392 = vmatprep.subr.bf16.mxu0 0
    %393 = vmatpush2.bf16.msra.mxu0 0
    %394 = vmatprep.subr.bf16.mxu0 0
    %395 = vmatpush2.bf16.msra.mxu0 0
    %396 = vmatprep.subr.bf16.mxu0 0
    %397 = vmatpush2.bf16.msra.mxu0 0
    %398 = vmatprep.subr.bf16.mxu0 0
    %399 = vmatpush2.bf16.msra.mxu0 0
    %400 = vmatprep.subr.bf16.mxu0 0
    %401 = vmatpush2.bf16.msra.mxu0 0
    %402 = vmatprep.mubr.bf16.mxu0 0
    %403 = vmatmul.mubr.bf16.gmra.mxu0 %v298
    %v404 = vpop.f32.mrf.mxu0
    %v405 = vadd.f32 %v320, %v404
    %v406 = vpop.f32.mrf.mxu0
    %v407 = vpop.f32.mrf.mxu0
    %v408 = vpop.f32.mrf.mxu0
    %409 = vdwg.mxu0
    %v410 = vmul.f32 %v405, 0.5
    %v411 = vmul.f32 %v410, 1.442695
    %v412 = vpow.pop %v411
    %v413 = vld [vmem:[#allocation5] sm:$0xff]
    %415 = vrot.lane.b32.xlu0 %v412, 64
    %v416 = vpop.permute.xlu0 %415
    %v418 = vmul.f32 %v413, %v416
    %v419 = vadd.f32 %v405, %v418
    %v420 = vpack.c.bf16 %v419, %v419
    %v421 = vld [vmem:[#allocation10] sm:$0xf]
    %v422 = vld [vmem:[#allocation10 + $0x4] sm:$0xf]
    %v423 = vld [vmem:[#allocation10 + $0x8] sm:$0xf]
    %v424 = vld [vmem:[#allocation10 + $0xc] sm:$0xf]
    %v425 = vld [vmem:[#allocation10 + $0x10] sm:$0xf]
    %v426 = vld [vmem:[#allocation10 + $0x14] sm:$0xf]
    %v427 = vld [vmem:[#allocation10 + $0x18] sm:$0xf]
    %v428 = vld [vmem:[#allocation10 + $0x1c] sm:$0xf]
    %v429 = vld [vmem:[%s7] sm:$0x1]
    %v431 = vlaneseq
    %v432 = vshrl.u32 %v431, 7
    %v433 = vsub.s32 0, %v432
    %v434 = vrot.slane %v429, %v433
    %v444 = vunpack.c.l.b16 %v421
    %v445 = vunpack.c.l.b16 %v422
    %v446 = vunpack.c.l.b16 %v423
    %v447 = vunpack.c.l.b16 %v424
    %v448 = vunpack.c.l.b16 %v425
    %v449 = vunpack.c.l.b16 %v426
    %v450 = vunpack.c.l.b16 %v427
    %v451 = vunpack.c.l.b16 %v428
    %v452 = vpack.c.b16 %v445, %v444
    %v453 = vpack.c.b16 %v447, %v446
    %v454 = vpack.c.b16 %v449, %v448
    %v455 = vpack.c.b16 %v451, %v450
    %vm460 = vcmask 523264
    %v462 = vsel %vm460, %v420, 0
    %464 = vmatprep.subr.bf16.mxu0 0
    %465 = vmatpush1.bf16.msra.mxu0 0
    %466 = vmatprep.subr.bf16.mxu0 0
    %467 = vmatpush1.bf16.msra.mxu0 0
    %468 = vmatprep.subr.bf16.mxu0 0
    %469 = vmatpush1.bf16.msra.mxu0 0
    %470 = vmatprep.subr.bf16.mxu0 0
    %471 = vmatpush1.bf16.msra.mxu0 0
    %472 = vmatprep.subr.bf16.mxu0 0
    %473 = vmatpush1.bf16.msra.mxu0 %v455
    %474 = vmatprep.subr.bf16.mxu0 0
    %475 = vmatpush1.bf16.msra.mxu0 %v454
    %476 = vmatprep.subr.bf16.mxu0 0
    %477 = vmatpush1.bf16.msra.mxu0 %v453
    %478 = vmatprep.subr.bf16.mxu0 0
    %479 = vmatpush1.bf16.msra.mxu0 %v452
    %480 = vmatprep.subr.bf16.mxu0 0
    %481 = vmatpush2.bf16.msra.mxu0 0
    %482 = vmatprep.subr.bf16.mxu0 0
    %483 = vmatpush2.bf16.msra.mxu0 0
    %484 = vmatprep.subr.bf16.mxu0 0
    %485 = vmatpush2.bf16.msra.mxu0 0
    %486 = vmatprep.subr.bf16.mxu0 0
    %487 = vmatpush2.bf16.msra.mxu0 0
    %488 = vmatprep.subr.bf16.mxu0 0
    %489 = vmatpush2.bf16.msra.mxu0 0
    %490 = vmatprep.subr.bf16.mxu0 0
    %491 = vmatpush2.bf16.msra.mxu0 0
    %492 = vmatprep.subr.bf16.mxu0 0
    %493 = vmatpush2.bf16.msra.mxu0 0
    %494 = vmatprep.subr.bf16.mxu0 0
    %495 = vmatpush2.bf16.msra.mxu0 0
    %496 = vmatprep.mubr.bf16.mxu0 0
    %497 = vmatmul.mubr.bf16.gmra.mxu0 %v462
    %v498 = vpop.f32.mrf.mxu0
    %v499 = vadd.f32 %v434, %v498
    %v500 = vpop.f32.mrf.mxu0
    %v501 = vpop.f32.mrf.mxu0
    %v502 = vpop.f32.mrf.mxu0
    %503 = vdwg.mxu0
    %v504 = vmax.f32 %v499, 0.0
    %v505 = vpack.c.bf16 %v504, %v504
    %v506 = vld [vmem:[#allocation11] sm:$0xff]
    %v507 = vld [vmem:[#allocation11 + $0x8] sm:$0xff]
    %v508 = vld [vmem:[#allocation11 + $0x10] sm:$0xff]
    %v509 = vld [vmem:[#allocation11 + $0x18] sm:$0xff]
    %v510 = vld [vmem:[#allocation11 + $0x20] sm:$0xff]
    %v511 = vld [vmem:[#allocation11 + $0x28] sm:$0xff]
    %v512 = vld [vmem:[#allocation11 + $0x30] sm:$0xff]
    %v513 = vld [vmem:[#allocation11 + $0x38] sm:$0xff]
    %v514 = vld [vmem:[#allocation11 + $0x40] sm:$0xff]
    %v515 = vld [vmem:[#allocation11 + $0x48] sm:$0xff]
    %v516 = vld [vmem:[#allocation11 + $0x50] sm:$0xff]
    %v517 = vld [vmem:[#allocation11 + $0x58] sm:$0xff]
    %v518 = vld [vmem:[#allocation11 + $0x60] sm:$0xff]
    %v519 = vld [vmem:[#allocation11 + $0x68] sm:$0xff]
    %v520 = vld [vmem:[#allocation11 + $0x70] sm:$0xff]
    %v521 = vld [vmem:[#allocation11 + $0x78] sm:$0xff]
    %v522 = vld [vmem:[%s9] sm:$0x3]
    %v524 = vlaneseq
    %v525 = vshrl.u32 %v524, 7
    %v526 = vsub.s32 0, %v525
    %v527 = vrot.slane %v522, %v526
    %v528 = vlaneseq
    %v529 = vshrl.u32 %v528, 7
    %v530 = vsub.s32 1, %v529
    %v531 = vrot.slane %v522, %v530
    %v550 = vunpack.c.l.b16 %v506
    %v551 = vunpack.c.h.b16 %v506
    %v552 = vunpack.c.l.b16 %v507
    %v553 = vunpack.c.h.b16 %v507
    %v554 = vunpack.c.l.b16 %v508
    %v555 = vunpack.c.h.b16 %v508
    %v556 = vunpack.c.l.b16 %v509
    %v557 = vunpack.c.h.b16 %v509
    %v558 = vunpack.c.l.b16 %v510
    %v559 = vunpack.c.h.b16 %v510
    %v560 = vunpack.c.l.b16 %v511
    %v561 = vunpack.c.h.b16 %v511
    %v562 = vunpack.c.l.b16 %v512
    %v563 = vunpack.c.h.b16 %v512
    %v564 = vunpack.c.l.b16 %v513
    %v565 = vunpack.c.h.b16 %v513
    %v566 = vunpack.c.l.b16 %v514
    %v567 = vunpack.c.h.b16 %v514
    %v568 = vunpack.c.l.b16 %v515
    %v569 = vunpack.c.h.b16 %v515
    %v570 = vunpack.c.l.b16 %v516
    %v571 = vunpack.c.h.b16 %v516
    %v572 = vunpack.c.l.b16 %v517
    %v573 = vunpack.c.h.b16 %v517
    %v574 = vunpack.c.l.b16 %v518
    %v575 = vunpack.c.h.b16 %v518
    %v576 = vunpack.c.l.b16 %v519
    %v577 = vunpack.c.h.b16 %v519
    %v578 = vunpack.c.l.b16 %v520
    %v579 = vunpack.c.h.b16 %v520
    %v580 = vunpack.c.l.b16 %v521
    %v581 = vunpack.c.h.b16 %v521
    %v582 = vpack.c.b16 %v552, %v550
    %v583 = vpack.c.b16 %v553, %v551
    %v584 = vpack.c.b16 %v556, %v554
    %v585 = vpack.c.b16 %v557, %v555
    %v586 = vpack.c.b16 %v560, %v558
    %v587 = vpack.c.b16 %v561, %v559
    %v588 = vpack.c.b16 %v564, %v562
    %v589 = vpack.c.b16 %v565, %v563
    %v590 = vpack.c.b16 %v568, %v566
    %v591 = vpack.c.b16 %v569, %v567
    %v592 = vpack.c.b16 %v572, %v570
    %v593 = vpack.c.b16 %v573, %v571
    %v594 = vpack.c.b16 %v576, %v574
    %v595 = vpack.c.b16 %v577, %v575
    %v596 = vpack.c.b16 %v580, %v578
    %v597 = vpack.c.b16 %v581, %v579
    %614 = vmatprep.subr.bf16.mxu0 %v597
    %615 = vmatpush1.bf16.msra.mxu0 %v596
    %616 = vmatprep.subr.bf16.mxu0 %v595
    %617 = vmatpush1.bf16.msra.mxu0 %v594
    %618 = vmatprep.subr.bf16.mxu0 %v593
    %619 = vmatpush1.bf16.msra.mxu0 %v592
    %620 = vmatprep.subr.bf16.mxu0 %v591
    %621 = vmatpush1.bf16.msra.mxu0 %v590
    %622 = vmatprep.subr.bf16.mxu0 %v589
    %623 = vmatpush1.bf16.msra.mxu0 %v588
    %624 = vmatprep.subr.bf16.mxu0 %v587
    %625 = vmatpush1.bf16.msra.mxu0 %v586
    %626 = vmatprep.subr.bf16.mxu0 %v585
    %627 = vmatpush1.bf16.msra.mxu0 %v584
    %628 = vmatprep.subr.bf16.mxu0 %v583
    %629 = vmatpush1.bf16.msra.mxu0 %v582
    %630 = vmatprep.subr.bf16.mxu0 0
    %631 = vmatpush2.bf16.msra.mxu0 0
    %632 = vmatprep.subr.bf16.mxu0 0
    %633 = vmatpush2.bf16.msra.mxu0 0
    %634 = vmatprep.subr.bf16.mxu0 0
    %635 = vmatpush2.bf16.msra.mxu0 0
    %636 = vmatprep.subr.bf16.mxu0 0
    %637 = vmatpush2.bf16.msra.mxu0 0
    %638 = vmatprep.subr.bf16.mxu0 0
    %639 = vmatpush2.bf16.msra.mxu0 0
    %640 = vmatprep.subr.bf16.mxu0 0
    %641 = vmatpush2.bf16.msra.mxu0 0
    %642 = vmatprep.subr.bf16.mxu0 0
    %643 = vmatpush2.bf16.msra.mxu0 0
    %644 = vmatprep.subr.bf16.mxu0 0
    %645 = vmatpush2.bf16.msra.mxu0 0
    %646 = vmatprep.mubr.bf16.mxu0 0
    %647 = vmatmul.mubr.bf16.gmra.mxu0 %v505
    %v648 = vpop.f32.mrf.mxu0
    %v649 = vadd.f32 %v527, %v648
    %v650 = vpop.f32.mrf.mxu0
    %v651 = vadd.f32 %v531, %v650
    %v652 = vpop.f32.mrf.mxu0
    %v653 = vpop.f32.mrf.mxu0
    %654 = vdwg.mxu0
    %655 = vst [vmem:[#allocation13] sm:$0xff] %v649
    %656 = vst [vmem:[#allocation13 + $0x8] sm:$0xff] %v651
    %657 = vst [vmem:[#allocation14] sm:$0xff] %v405
    // Predicated region
    $region66: #{tpu_custom_call.1} parent=1 // pred_check
      _
    $region67: #{tpu_custom_call.1} parent=1 // pred_check_branch
      %659 = sbr.rel (0) target = $region69
    $region68: #{tpu_custom_call.1} parent=1 // pred_region
      %s661 = ssub.s32 256, 256
      %662 = vsyncadd [#allocation4], %s661
      %s664 = sshll.u32 [#allocation13], 4
      %s665 = int_to_ptr.vmem [resolvable:$true] %s664
      %667 = dma.vmem_to_hbm [thread:$0]  %s665, 256, %s10, [#allocation4]
    $region69: #{tpu_custom_call.1} parent=1 // pred_fallthru
      _
    // Predicated region
    $region70: #{tpu_custom_call.1} parent=1 // pred_check
      _
    $region71: #{tpu_custom_call.1} parent=1 // pred_check_branch
      %669 = sbr.rel (0) target = $region73
    $region72: #{tpu_custom_call.1} parent=1 // pred_region
      %s671 = ssub.s32 128, 128
      %672 = vsyncadd [#allocation15], %s671
      %s674 = sshll.u32 [#allocation14], 4
      %s675 = int_to_ptr.vmem [resolvable:$true] %s674
      %677 = dma.vmem_to_hbm [thread:$0]  %s675, 128, %s11, [#allocation15]
    $region73: #{tpu_custom_call.1} parent=1 // pred_fallthru
      _
    // Predicated region
    $region74: #{tpu_custom_call.1} parent=1 // pred_check
      _
    $region75: #{tpu_custom_call.1} parent=1 // pred_check_branch
      %679 = sbr.rel (0) target = $region77
    $region76: #{tpu_custom_call.1} parent=1 // pred_region
      %680 = dma.done [#allocation4], 256
    $region77: #{tpu_custom_call.1} parent=1 // pred_fallthru
      _
    // Predicated region
    $region78: #{tpu_custom_call.1} parent=1 // pred_check
      _
    $region79: #{tpu_custom_call.1} parent=1 // pred_check_branch
      %682 = sbr.rel (0) target = $region81
    $region80: #{tpu_custom_call.1} parent=1 // pred_region
      %683 = dma.done [#allocation15], 128
    $region81: #{tpu_custom_call.1} parent=1 // pred_fallthru
      _
    %684 = vsyncpa [#allocation3], 1
    %685 = vsyncpa [#allocation6], 1
    %686 = vsyncpa [#allocation9], 1
    %687 = vsyncpa [#allocation12], 1
    %688 = vsyncpa [#allocation4], 1
    %689 = vsyncpa [#allocation15], 1

</llo_original>
